<compile_context>
chip_gen: v6e
topology: v6e:2x2x1
jax: 0.10.0
libtpu: 0.0.40
codegen_flags: <defaults>
</compile_context>

<pallas_src>
import functools

import jax
import jax.numpy as jnp
from jax import lax
from jax.experimental import pallas as pl
from jax.experimental.pallas import tpu as pltpu


def _round_up(x, m):
    return (x + m - 1) // m * m


def _cdiv(a, b):
    return (a + b - 1) // b


def _vmem_capacity_bytes():
    try:
        return int(pltpu.get_tpu_info().vmem_capacity_bytes)
    except Exception:
        return 64 * 1024 * 1024  # v7x-safe conservative fallback


# ---------------------------------------------------------------------------
# Kernel 1a: tiled conv-as-matmul + per-(sample, p-tile, channel) sum / sumsq.
# grid = (N, n_p, n_k); K innermost reduction; p-tile-local partial stats, so
# no output block is revisited across p (p axis is "parallel").
# ---------------------------------------------------------------------------
def _conv_stats_kernel(p_ref, w_ref, y_ref, stats_ref, acc_ref):
    k_idx = pl.program_id(2)

    @pl.when(k_idx == 0)
    def _():
        acc_ref[...] = jnp.zeros_like(acc_ref)

    acc_ref[...] += jnp.dot(p_ref[...], w_ref[...],
                            preferred_element_type=jnp.float32)

    @pl.when(k_idx == pl.num_programs(2) - 1)
    def _():
        y = acc_ref[...]                                 # f32 accumulator
        y_ref[...] = y.astype(y_ref.dtype)               # bf16/f32 intermediate
        # Stats are taken from the f32 accumulator (pre-rounding), deliberately.
        stats_ref[0:1, :] = jnp.sum(y, axis=0, keepdims=True)        # (1, C_pad)
        stats_ref[1:2, :] = jnp.sum(y * y, axis=0, keepdims=True)    # (1, C_pad)


# ---------------------------------------------------------------------------
# Kernel 1b: normalize=False fast path — conv + LeakyReLU fused, single pass.
# ---------------------------------------------------------------------------
def _conv_lrelu_kernel(p_ref, w_ref, o_ref, acc_ref, *, negative_slope):
    k_idx = pl.program_id(2)

    @pl.when(k_idx == 0)
    def _():
        acc_ref[...] = jnp.zeros_like(acc_ref)

    acc_ref[...] += jnp.dot(p_ref[...], w_ref[...],
                            preferred_element_type=jnp.float32)

    @pl.when(k_idx == pl.num_programs(2) - 1)
    def _():
        y = acc_ref[...]
        o_ref[...] = jnp.where(y >= 0, y, negative_slope * y).astype(o_ref.dtype)


# ---------------------------------------------------------------------------
# Kernel 2: instance-norm finalize (one-pass mean/var) + LeakyReLU(0.2).
# ---------------------------------------------------------------------------
def _norm_lrelu_kernel(y_ref, stats_ref, o_ref, *, inv_p, eps, negative_slope):
    y = y_ref[...].astype(jnp.float32)
    mean = stats_ref[0:1, :] * inv_p
    ex2 = stats_ref[1:2, :] * inv_p
    var = jnp.maximum(ex2 - mean * mean, 0.0)
    y = (y - mean) * lax.rsqrt(var + eps)                # rsqrt on the EUP
    o_ref[...] = jnp.where(y >= 0, y, negative_slope * y).astype(o_ref.dtype)


def unet_down(x, weight, *, normalize=True, dropout=0.0, eps=1e-5,
              negative_slope=0.2, compute_dtype=jnp.bfloat16, out_dtype=None,
              tile_p=None, tile_k=None, out_layout="NCHW"):
    """Forward pass of UNetDown.

    x:      (N, Cin, H, W)  float32, NCHW (PyTorch convention)
    weight: (Cout, Cin, 4, 4) float32 (PyTorch Conv2d weight, bias=False)
    Returns (N, Cout, H//2, W//2) NCHW, or NHWC if out_layout="NHWC".
    Use out_layout="NHWC" + out_dtype=jnp.bfloat16 to chain layers without
    boundary transposes / up-casts.
    """
    N, Cin, H, W = x.shape
    Cout, Cin_w, kh, kw = weight.shape
    assert Cin_w == Cin and (kh, kw) == (4, 4)
    stride, pad = 2, 1
    Ho = (H + 2 * pad - kh) // stride + 1
    Wo = (W + 2 * pad - kw) // stride + 1
    P = Ho * Wo
    K = Cin * kh * kw

    if out_dtype is None:
        out_dtype = x.dtype
    out_dtype = jnp.dtype(out_dtype)
    compute_dtype = jnp.dtype(compute_dtype)
    in_item = compute_dtype.itemsize
    y_store_dtype = compute_dtype if normalize else out_dtype
    y_item = jnp.dtype(y_store_dtype).itemsize
    out_item = out_dtype.itemsize

    C_pad = _round_up(Cout, 128)
    K_pad128 = _round_up(K, 128)

    # Generation-aware VMEM budget (~40 MiB on v7x, ~80 MiB on v5e/v6e).
    vmem_cap = _vmem_capacity_bytes()
    vmem_budget = min(vmem_cap * 5 // 8, 96 * 1024 * 1024)

    # ---- tile_k: keep the whole weight resident in VMEM when it fits --------
    if tile_k is None:
        if 2 * K_pad128 * C_pad * in_item <= vmem_budget // 3:
            tile_k = K_pad128     # n_k == 1 -> weight DMA'd exactly once
        else:
            tile_k = min(512, K_pad128)
    assert tile_k % 128 == 0
    K_pad = _round_up(K, tile_k)
    n_k = K_pad // tile_k

    # ---- tile_p: as large as the VMEM budget allows, minimal over-padding ---
    def _p1_vmem(tp):
        return (2 * tp * tile_k * in_item        # patch tiles (double-buffered)
                + 2 * tile_k * C_pad * in_item   # weight tiles
                + 2 * tp * C_pad * y_item        # y/out tiles
                + 2 * 2 * C_pad * 4              # stats tiles
                + tp * C_pad * 4)                # f32 accumulator scratch

    if tile_p is None:
        target = 2048 if C_pad <= 256 else 1024
        target = max(8, min(target, _round_up(P, 8)))
        while True:
            cand = _round_up(_cdiv(P, _cdiv(P, target)), 8)
            if _p1_vmem(cand) <= vmem_budget or target <= 8:
                tile_p = cand
                break
            target //= 2
    assert tile_p % 8 == 0
    P_pad = _round_up(P, tile_p)
    n_p = P_pad // tile_p

    # im2col (channels-last) built in XLA; allow_input_fusion lets XLA fuse the
    # patch producer into the pallas_call operand.  Flatten order (kh, kw, Cin).
    xt = jnp.transpose(x, (0, 2, 3, 1))                          # NHWC
    xp = jnp.pad(xt, ((0, 0), (pad, pad), (pad, pad), (0, 0)))
    taps = [xp[:, i::stride, j::stride, :][:, :Ho, :Wo, :]
            for i in range(kh) for j in range(kw)]               # 16 x (N,Ho,Wo,Cin)
    patches = jnp.stack(taps, axis=3).reshape(N, P, K)
    patches = jnp.pad(patches, ((0, 0), (0, P_pad - P), (0, K_pad - K)))
    patches = patches.astype(compute_dtype)

    w_mat = jnp.transpose(weight, (2, 3, 1, 0)).reshape(K, Cout)
    w_mat = jnp.pad(w_mat, ((0, K_pad - K), (0, C_pad - Cout)))
    w_mat = w_mat.astype(compute_dtype)

    in_specs = [
        pl.BlockSpec((pl.Squeezed(), tile_p, tile_k), lambda n, p, k: (n, p, k)),
        pl.BlockSpec((tile_k, C_pad), lambda n, p, k: (k, 0)),
    ]
    y_spec = pl.BlockSpec((pl.Squeezed(), tile_p, C_pad),
                          lambda n, p, k: (n, p, 0))
    # Weight HBM traffic: fetched once when resident (n_k==1, index never
    # changes), else re-streamed for every (n, p).
    weight_streams = 1 if n_k == 1 else N * n_p
    flops1 = 2 * N * P_pad * K_pad * C_pad
    bytes1 = (N * P_pad * K_pad * in_item
              + weight_streams * K_pad * C_pad * in_item
              + N * P_pad * C_pad * y_item)
    compiler_params1 = pltpu.CompilerParams(
        # No output block is revisited across n or p (p-tile-local stats), so
        # both axes are parallel (v7x megacore even at N==1); k is the
        # accumulated reduction.
        dimension_semantics=("parallel", "parallel", "arbitrary"),
        vmem_limit_bytes=vmem_budget,
        allow_input_fusion=[True, False],
    )

    if normalize:
        # ---- pass 1: conv + per-(sample, p-tile, channel) sum / sumsq -------
        y_flat, stats_part = pl.pallas_call(
            _conv_stats_kernel,
            out_shape=(jax.ShapeDtypeStruct((N, P_pad, C_pad), y_store_dtype),
                       jax.ShapeDtypeStruct((N, n_p, 2, C_pad), jnp.float32)),
            grid_spec=pltpu.PrefetchScalarGridSpec(
                num_scalar_prefetch=0,
                grid=(N, n_p, n_k),
                in_specs=in_specs,
                out_specs=(
                    y_spec,
                    pl.BlockSpec((pl.Squeezed(), pl.Squeezed(), 2, C_pad),
                                 lambda n, p, k: (n, p, 0, 0)),
                ),
                scratch_shapes=[pltpu.VMEM((tile_p, C_pad), jnp.float32)],
            ),
            compiler_params=compiler_params1,
            cost_estimate=pl.CostEstimate(
                flops=flops1, transcendentals=0,
                bytes_accessed=bytes1 + N * n_p * 2 * C_pad * 4),
        )(patches, w_mat)

        # Tiny XLA reduce over the per-tile partial statistics.
        stats = stats_part.sum(axis=1)                           # (N, 2, C_pad)

        # ---- pass 2: instance-norm finalize + LeakyReLU ----------------------
        norm_kernel = functools.partial(
            _norm_lrelu_kernel, inv_p=1.0 / P, eps=eps,
            negative_slope=negative_slope)
        # Reuse the conv-intermediate HBM buffer for the output when possible.
        io_alias = {0: 0} if jnp.dtype(y_store_dtype) == out_dtype else {}
        out_flat = pl.pallas_call(
            norm_kernel,
            out_shape=jax.ShapeDtypeStruct((N, P_pad, C_pad), out_dtype),
            grid_spec=pltpu.PrefetchScalarGridSpec(
                num_scalar_prefetch=0,
                grid=(N, n_p),
                in_specs=[
                    pl.BlockSpec((pl.Squeezed(), tile_p, C_pad),
                                 lambda n, p: (n, p, 0)),
                    pl.BlockSpec((pl.Squeezed(), 2, C_pad),
                                 lambda n, p: (n, 0, 0)),
                ],
                out_specs=pl.BlockSpec((pl.Squeezed(), tile_p, C_pad),
                                       lambda n, p: (n, p, 0)),
            ),
            compiler_params=pltpu.CompilerParams(
                dimension_semantics=("parallel", "parallel"),
                vmem_limit_bytes=vmem_budget,
            ),
            input_output_aliases=io_alias,
            cost_estimate=pl.CostEstimate(
                flops=8 * N * P_pad * C_pad,
                transcendentals=N * n_p * C_pad,
                bytes_accessed=(N * P_pad * C_pad * (y_item + out_item)
                                + N * 2 * C_pad * 4)),
        )(y_flat, stats)
    else:
        # ---- normalize=False fast path: single pass, LeakyReLU in epilogue --
        conv_kernel = functools.partial(_conv_lrelu_kernel,
                                        negative_slope=negative_slope)
        out_flat = pl.pallas_call(
            conv_kernel,
            out_shape=jax.ShapeDtypeStruct((N, P_pad, C_pad), out_dtype),
            grid_spec=pltpu.PrefetchScalarGridSpec(
                num_scalar_prefetch=0,
                grid=(N, n_p, n_k),
                in_specs=in_specs,
                out_specs=y_spec,
                scratch_shapes=[pltpu.VMEM((tile_p, C_pad), jnp.float32)],
            ),
            compiler_params=compiler_params1,
            cost_estimate=pl.CostEstimate(
                flops=flops1 + 2 * N * P_pad * C_pad, transcendentals=0,
                bytes_accessed=bytes1),
        )(patches, w_mat)

    out = out_flat[:, :P, :Cout].reshape(N, Ho, Wo, Cout)        # NHWC
    if out_layout == "NCHW":
        out = jnp.transpose(out, (0, 3, 1, 2))                   # boundary only
    return out


def _reference(x, weight, eps=1e-5, slope=0.2, normalize=True):
    """Pure-JAX reference (Conv2d k=4 s=2 p=1 -> InstanceNorm2d -> LeakyReLU)."""
    y = lax.conv_general_dilated(
        x, weight, window_strides=(2, 2), padding=((1, 1), (1, 1)),
        dimension_numbers=("NCHW", "OIHW", "NCHW"))
    if normalize:
        mean = y.mean(axis=(2, 3), keepdims=True)
        var = ((y - mean) ** 2).mean(axis=(2, 3), keepdims=True)
        y = (y - mean) * lax.rsqrt(var + eps)
    return jnp.where(y >= 0, y, slope * y)


if __name__ == "__main__":
    key = jax.random.PRNGKey(0)
    kx1, kw1, kx2, kw2 = jax.random.split(key, 4)

    # Config 1: prompt-sized shapes (single P tile, resident weight, n_k == 1).
    N, Cin, H, W, Cout = 2, 4, 16, 16, 8
    x1 = jax.random.normal(kx1, (N, Cin, H, W), dtype=jnp.float32)
    b1 = 1.0 / ((Cin * 16) ** 0.5)
    w1 = jax.random.uniform(kw1, (Cout, Cin, 4, 4), jnp.float32,
                            minval=-b1, maxval=b1)
    ref1 = _reference(x1, w1)

    # f32 matmul path -> tight tolerance (also exercises pass-2 output aliasing).
    out_f32 = jax.block_until_ready(
        jax.jit(functools.partial(unet_down, compute_dtype=jnp.float32))(x1, w1))
    assert out_f32.shape == (N, Cout, H // 2, W // 2), out_f32.shape
    assert jnp.allclose(out_f32, ref1, atol=1e-4, rtol=1e-4), \
        float(jnp.abs(out_f32 - ref1).max())

    # Default bf16 matmul + bf16 intermediate path -> looser tolerance.
    out_bf16 = jax.block_until_ready(jax.jit(unet_down)(x1, w1))
    assert jnp.allclose(out_bf16, ref1, atol=5e-2, rtol=5e-2), \
        float(jnp.abs(out_bf16 - ref1).max())

    # normalize=False fast path (single fused pass).
    ref1_nn = _reference(x1, w1, normalize=False)
    out_nn = jax.block_until_ready(
        jax.jit(functools.partial(unet_down, normalize=False,
                                  compute_dtype=jnp.float32))(x1, w1))
    assert jnp.allclose(out_nn, ref1_nn, atol=1e-4, rtol=1e-4), \
        float(jnp.abs(out_nn - ref1_nn).max())

    # Config 2: forces multi-tile P (2 tiles) and K (2 tiles), exercising the
    # accumulator loop and the partial-stats reduction across p tiles.
    N2, Cin2, Cout2 = 2, 16, 8
    x2 = jax.random.normal(kx2, (N2, Cin2, 16, 16), dtype=jnp.float32)
    b2 = 1.0 / ((Cin2 * 16) ** 0.5)
    w2 = jax.random.uniform(kw2, (Cout2, Cin2, 4, 4), jnp.float32,
                            minval=-b2, maxval=b2)
    ref2 = _reference(x2, w2)
    out2 = jax.block_until_ready(
        jax.jit(functools.partial(unet_down, compute_dtype=jnp.float32,
                                  tile_p=32, tile_k=128))(x2, w2))
    assert jnp.allclose(out2, ref2, atol=1e-4, rtol=1e-4), \
        float(jnp.abs(out2 - ref2).max())

    # Config 2, normalize=False, multi-k fused path.
    ref2_nn = _reference(x2, w2, normalize=False)
    out2_nn = jax.block_until_ready(
        jax.jit(functools.partial(unet_down, normalize=False,
                                  compute_dtype=jnp.float32,
                                  tile_p=32, tile_k=128))(x2, w2))
    assert jnp.allclose(out2_nn, ref2_nn, atol=1e-4, rtol=1e-4), \
        float(jnp.abs(out2_nn - ref2_nn).max())

    print("KERNEL_OK")
</pallas_src>

<mosaic_0001>
module attributes {stable_mosaic.version = 11 : i64} {
  func.func @_norm_lrelu_kernel(%arg0: i32, %arg1: i32, %arg2: memref<1x64x128xf32, #tpu.memory_space<vmem>>, %arg3: memref<1x2x128xf32, #tpu.memory_space<vmem>>, %arg4: memref<1x64x128xf32, #tpu.memory_space<vmem>>) attributes {dimension_semantics = [#tpu.dimension_semantics<parallel>, #tpu.dimension_semantics<parallel>], iteration_bounds = array<i64: 2, 1>, scalar_prefetch = 0 : i64, scratch_operands = 0 : i64, tpu.core_type = #tpu.core_type<tc>, window_params = [{transform_indices = @transform_0, window_bounds = array<i64: 1, 64, 128>}, {transform_indices = @transform_1, window_bounds = array<i64: 1, 2, 128>}, {transform_indices = @transform_2, window_bounds = array<i64: 1, 64, 128>}]} {
    %c0 = arith.constant 0 : index
    %c0_0 = arith.constant 0 : index
    %c0_1 = arith.constant 0 : index
    %0 = vector.load %arg2[%c0, %c0_0, %c0_1] : memref<1x64x128xf32, #tpu.memory_space<vmem>>, vector<1x64x128xf32>
    %1 = vector.shape_cast %0 : vector<1x64x128xf32> to vector<64x128xf32>
    %c0_2 = arith.constant 0 : index
    %c0_3 = arith.constant 0 : index
    %c0_4 = arith.constant 0 : index
    %2 = vector.load %arg3[%c0_2, %c0_3, %c0_4] : memref<1x2x128xf32, #tpu.memory_space<vmem>>, vector<1x1x128xf32>
    %3 = vector.shape_cast %2 : vector<1x1x128xf32> to vector<1x128xf32>
    %cst = arith.constant 1.562500e-02 : f32
    %4 = vector.broadcast %cst : f32 to vector<1x128xf32>
    %5 = arith.mulf %3, %4 : vector<1x128xf32>
    %c0_5 = arith.constant 0 : index
    %c1 = arith.constant 1 : index
    %c0_6 = arith.constant 0 : index
    %6 = vector.load %arg3[%c0_5, %c1, %c0_6] : memref<1x2x128xf32, #tpu.memory_space<vmem>>, vector<1x1x128xf32>
    %7 = vector.shape_cast %6 : vector<1x1x128xf32> to vector<1x128xf32>
    %cst_7 = arith.constant 1.562500e-02 : f32
    %8 = vector.broadcast %cst_7 : f32 to vector<1x128xf32>
    %9 = arith.mulf %7, %8 : vector<1x128xf32>
    %10 = arith.mulf %5, %5 : vector<1x128xf32>
    %11 = arith.subf %9, %10 : vector<1x128xf32>
    %cst_8 = arith.constant 0.000000e+00 : f32
    %12 = vector.broadcast %cst_8 : f32 to vector<1x128xf32>
    %13 = arith.maximumf %11, %12 : vector<1x128xf32>
    %14 = vector.broadcast %5 : vector<1x128xf32> to vector<64x128xf32>
    %15 = arith.subf %1, %14 : vector<64x128xf32>
    %cst_9 = arith.constant 9.99999974E-6 : f32
    %16 = vector.broadcast %cst_9 : f32 to vector<1x128xf32>
    %17 = arith.addf %13, %16 : vector<1x128xf32>
    %18 = math.rsqrt %17 : vector<1x128xf32>
    %19 = vector.broadcast %18 : vector<1x128xf32> to vector<64x128xf32>
    %20 = arith.mulf %15, %19 : vector<64x128xf32>
    %cst_10 = arith.constant 0.000000e+00 : f32
    %21 = vector.broadcast %cst_10 : f32 to vector<64x128xf32>
    %22 = arith.cmpf oge, %20, %21 : vector<64x128xf32>
    %cst_11 = arith.constant 2.000000e-01 : f32
    %23 = vector.broadcast %cst_11 : f32 to vector<64x128xf32>
    %24 = arith.mulf %23, %20 : vector<64x128xf32>
    %25 = arith.select %22, %20, %24 : vector<64x128xi1>, vector<64x128xf32>
    %c0_12 = arith.constant 0 : index
    %c0_13 = arith.constant 0 : index
    %c0_14 = arith.constant 0 : index
    %26 = vector.load %arg4[%c0_12, %c0_13, %c0_14] : memref<1x64x128xf32, #tpu.memory_space<vmem>>, vector<1x64x128xf32>
    %27 = vector.shape_cast %26 : vector<1x64x128xf32> to vector<64x128xf32>
    %28 = vector.shape_cast %25 : vector<64x128xf32> to vector<1x64x128xf32>
    tpu.vector_store %arg4[%c0_12, %c0_13, %c0_14], %28 {strides = array<i32>} : memref<1x64x128xf32, #tpu.memory_space<vmem>>, vector<1x64x128xf32>,
    return
  }
  func.func @transform_0(%arg0: i32, %arg1: i32) -> (i32, i32, i32) {
    %c0_i32 = arith.constant 0 : i32
    %c0_i32_0 = arith.constant 0 : i32
    return %arg0, %arg1, %c0_i32 : i32, i32, i32
  }
  func.func @transform_1(%arg0: i32, %arg1: i32) -> (i32, i32, i32) {
    %c0_i32 = arith.constant 0 : i32
    %c0_i32_0 = arith.constant 0 : i32
    %c0_i32_1 = arith.constant 0 : i32
    return %arg0, %c0_i32, %c0_i32_0 : i32, i32, i32
  }
  func.func @transform_2(%arg0: i32, %arg1: i32) -> (i32, i32, i32) {
    %c0_i32 = arith.constant 0 : i32
    %c0_i32_0 = arith.constant 0 : i32
    return %arg0, %arg1, %c0_i32 : i32, i32, i32
  }
}

module attributes {stable_mosaic.version = 11 : i64} {
  func.func @_conv_stats_kernel(%arg0: i32, %arg1: i32, %arg2: i32, %arg3: memref<1x64x128xf32, #tpu.memory_space<vmem>>, %arg4: memref<128x128xf32, #tpu.memory_space<vmem>>, %arg5: memref<1x64x128xf32, #tpu.memory_space<vmem>>, %arg6: memref<1x1x2x128xf32, #tpu.memory_space<vmem>>, %arg7: memref<64x128xf32, #tpu.memory_space<vmem>>) attributes {dimension_semantics = [#tpu.dimension_semantics<parallel>, #tpu.dimension_semantics<parallel>, #tpu.dimension_semantics<arbitrary>], iteration_bounds = array<i64: 2, 1, 1>, scalar_prefetch = 0 : i64, scratch_operands = 1 : i64, tpu.core_type = #tpu.core_type<tc>, window_params = [{transform_indices = @transform_0, window_bounds = array<i64: 1, 64, 128>}, {transform_indices = @transform_1, window_bounds = array<i64: 128, 128>}, {transform_indices = @transform_2, window_bounds = array<i64: 1, 64, 128>}, {transform_indices = @transform_3, window_bounds = array<i64: 1, 1, 2, 128>}]} {
    %c0_i32 = arith.constant 0 : i32
    %0 = arith.cmpi eq, %arg2, %c0_i32 : i32
    %1 = arith.extui %0 : i1 to i32
    %c0_i32_0 = arith.constant 0 : i32
    %2 = arith.cmpi ne, %1, %c0_i32_0 : i32
    scf.if %2 {
      %cst_11 = arith.constant 0.000000e+00 : f32
      %13 = vector.broadcast %cst_11 : f32 to vector<64x128xf32>
      %c0_12 = arith.constant 0 : index
      %c0_13 = arith.constant 0 : index
      %14 = vector.load %arg7[%c0_12, %c0_13] : memref<64x128xf32, #tpu.memory_space<vmem>>, vector<64x128xf32>
      tpu.vector_store %arg7[%c0_12, %c0_13], %13 {strides = array<i32>} : memref<64x128xf32, #tpu.memory_space<vmem>>, vector<64x128xf32>,
    } else {
    }
    %c0 = arith.constant 0 : index
    %c0_1 = arith.constant 0 : index
    %3 = vector.load %arg7[%c0, %c0_1] : memref<64x128xf32, #tpu.memory_space<vmem>>, vector<64x128xf32>
    %c0_2 = arith.constant 0 : index
    %c0_3 = arith.constant 0 : index
    %c0_4 = arith.constant 0 : index
    %4 = vector.load %arg3[%c0_2, %c0_3, %c0_4] : memref<1x64x128xf32, #tpu.memory_space<vmem>>, vector<1x64x128xf32>
    %5 = vector.shape_cast %4 : vector<1x64x128xf32> to vector<64x128xf32>
    %c0_5 = arith.constant 0 : index
    %c0_6 = arith.constant 0 : index
    %6 = vector.load %arg4[%c0_5, %c0_6] : memref<128x128xf32, #tpu.memory_space<vmem>>, vector<128x128xf32>
    %cst = arith.constant dense<0.000000e+00> : vector<64x128xf32>
    %7 = tpu.matmul %5, %6, %cst {dimension_numbers = #tpu.dot_dimension_numbers<[1], [0], [0], [1], [0, 0, 1, 1], [], []>} : vector<64x128xf32>, vector<128x128xf32>, vector<64x128xf32> -> vector<64x128xf32>
    %8 = arith.addf %3, %7 : vector<64x128xf32>
    %c0_7 = arith.constant 0 : index
    %c0_8 = arith.constant 0 : index
    %9 = vector.load %arg7[%c0_7, %c0_8] : memref<64x128xf32, #tpu.memory_space<vmem>>, vector<64x128xf32>
    tpu.vector_store %arg7[%c0_7, %c0_8], %8 {strides = array<i32>} : memref<64x128xf32, #tpu.memory_space<vmem>>, vector<64x128xf32>,
    %c0_i32_9 = arith.constant 0 : i32
    %10 = arith.cmpi eq, %arg2, %c0_i32_9 : i32
    %11 = arith.extui %10 : i1 to i32
    %c0_i32_10 = arith.constant 0 : i32
    %12 = arith.cmpi ne, %11, %c0_i32_10 : i32
    scf.if %12 {
      %c0_11 = arith.constant 0 : index
      %c0_12 = arith.constant 0 : index
      %13 = vector.load %arg7[%c0_11, %c0_12] : memref<64x128xf32, #tpu.memory_space<vmem>>, vector<64x128xf32>
      %c0_13 = arith.constant 0 : index
      %c0_14 = arith.constant 0 : index
      %c0_15 = arith.constant 0 : index
      %14 = vector.load %arg5[%c0_13, %c0_14, %c0_15] : memref<1x64x128xf32, #tpu.memory_space<vmem>>, vector<1x64x128xf32>
      %15 = vector.shape_cast %14 : vector<1x64x128xf32> to vector<64x128xf32>
      %16 = vector.shape_cast %13 : vector<64x128xf32> to vector<1x64x128xf32>
      tpu.vector_store %arg5[%c0_13, %c0_14, %c0_15], %16 {strides = array<i32>} : memref<1x64x128xf32, #tpu.memory_space<vmem>>, vector<1x64x128xf32>,
      %cst_16 = arith.constant dense<0.000000e+00> : vector<128xf32>
      %17 = vector.multi_reduction <add>, %13, %cst_16 [0] : vector<64x128xf32> to vector<128xf32>
      %18 = vector.shape_cast %17 : vector<128xf32> to vector<1x128xf32>
      %c0_17 = arith.constant 0 : index
      %c0_18 = arith.constant 0 : index
      %c0_19 = arith.constant 0 : index
      %c0_20 = arith.constant 0 : index
      %19 = vector.load %arg6[%c0_17, %c0_18, %c0_19, %c0_20] : memref<1x1x2x128xf32, #tpu.memory_space<vmem>>, vector<1x1x1x128xf32>
      %20 = vector.shape_cast %19 : vector<1x1x1x128xf32> to vector<1x128xf32>
      %21 = vector.shape_cast %18 : vector<1x128xf32> to vector<1x1x1x128xf32>
      tpu.vector_store %arg6[%c0_17, %c0_18, %c0_19, %c0_20], %21 {strides = array<i32>} : memref<1x1x2x128xf32, #tpu.memory_space<vmem>>, vector<1x1x1x128xf32>,
      %22 = arith.mulf %13, %13 : vector<64x128xf32>
      %cst_21 = arith.constant dense<0.000000e+00> : vector<128xf32>
      %23 = vector.multi_reduction <add>, %22, %cst_21 [0] : vector<64x128xf32> to vector<128xf32>
      %24 = vector.shape_cast %23 : vector<128xf32> to vector<1x128xf32>
      %c0_22 = arith.constant 0 : index
      %c0_23 = arith.constant 0 : index
      %c1 = arith.constant 1 : index
      %c0_24 = arith.constant 0 : index
      %25 = vector.load %arg6[%c0_22, %c0_23, %c1, %c0_24] : memref<1x1x2x128xf32, #tpu.memory_space<vmem>>, vector<1x1x1x128xf32>
      %26 = vector.shape_cast %25 : vector<1x1x1x128xf32> to vector<1x128xf32>
      %27 = vector.shape_cast %24 : vector<1x128xf32> to vector<1x1x1x128xf32>
      tpu.vector_store %arg6[%c0_22, %c0_23, %c1, %c0_24], %27 {strides = array<i32>} : memref<1x1x2x128xf32, #tpu.memory_space<vmem>>, vector<1x1x1x128xf32>,
    } else {
    }
    return
  }
  func.func @transform_0(%arg0: i32, %arg1: i32, %arg2: i32) -> (i32, i32, i32) {
    %c0_i32 = arith.constant 0 : i32
    return %arg0, %arg1, %arg2 : i32, i32, i32
  }
  func.func @transform_1(%arg0: i32, %arg1: i32, %arg2: i32) -> (i32, i32) {
    %c0_i32 = arith.constant 0 : i32
    %c0_i32_0 = arith.constant 0 : i32
    return %arg2, %c0_i32 : i32, i32
  }
  func.func @transform_2(%arg0: i32, %arg1: i32, %arg2: i32) -> (i32, i32, i32) {
    %c0_i32 = arith.constant 0 : i32
    %c0_i32_0 = arith.constant 0 : i32
    return %arg0, %arg1, %c0_i32 : i32, i32, i32
  }
  func.func @transform_3(%arg0: i32, %arg1: i32, %arg2: i32) -> (i32, i32, i32, i32) {
    %c0_i32 = arith.constant 0 : i32
    %c0_i32_0 = arith.constant 0 : i32
    %c0_i32_1 = arith.constant 0 : i32
    return %arg0, %arg1, %c0_i32, %c0_i32_0 : i32, i32, i32, i32
  }
}

</mosaic_0001>

<llo_original>
// kernel: unet_down.3
$region0: #{unet_down.3}
  #allocation0 [shape = 'u32[]', space=smem, size = 0x4, offset = 0x4, fixed_abs, tag = 'smem constant byte address 0x4 - core index']
  #allocation1 [shape = 'u32[144,128]{1,0:T(1,128)}', space=vmem, size = 0x12000, scoped, tag = 'internal scratch']
  %s0 = inlined_call_operand.vmem [shape: f32[2,64,128], index: 0, kind: input, shape index: {}, may-alias: {0,2}]
  %s1 = inlined_call_operand.vmem [shape: f32[2,2,128], index: 1, kind: input, shape index: {}]
  %s2 = inlined_call_operand.vmem [shape: f32[2,64,128], index: 2, kind: output, shape index: {}, may-alias: {0,2}]
  %s3 = sld [smem:[#allocation0]]
  $region41: #{unet_down.3} parent=0
    _
  %s5 = ssub.s32 1, %s3
  %s6 = scalar_select 0, %s5, %s3
  loop: start=0, step=1, limit=4
  $region2: #{unet_down.3} parent=0 // loop_pre_header
    _
  $region3: #{unet_down.3} parent=0 // loop_header
    %s8 = sphi 0, %s12
    %p9 = scmp.ge.s32.totalorder %s8, 4
    %s15 = sphi 0, %s27
    %s16 = sphi 0, %s23
    %s17 = sphi 0, %s15
    %s18 = sphi 0, %s16
    %s19 = sphi 0, %s17
    %s20 = sphi 0, %s18
    %s32 = sphi 0, %s34
    %s35 = sphi 0, %s32
    %s36 = sphi 0, %s35
    %s52 = sphi 0, %s36
    %s58 = sphi 0, %s60
    %s61 = sphi 0, %s58
    %s62 = sphi 0, %s61
    %s78 = sphi 0, %s62
    %s86 = sphi 0, %s88
    %s89 = sphi 0, %s86
    %s90 = sphi 0, %s89
    %s106 = sphi 0, %s90
  $region4: #{unet_down.3} parent=0 // loop_header_branch
    %11 = sbr.rel (%p9) target = $region8
  $region5: #{unet_down.3} parent=0 // loop_body
    %s13 = ssub.s32 %s8, 1
    %s14 = ssub.s32 %s8, 2
    %s21 = sadd.s32 1, %s16
    %p22 = scmp.ge.s32.totalorder %s21, 1
    %s23 = scalar_select %p22, 0, %s21
    %s24 = sadd.s32 1, %s15
    %s25 = scalar_select %p22, %s24, %s15
    %p26 = scmp.ge.s32.totalorder %s25, 2
    %s27 = scalar_select %p26, 0, %s25
    %s28 = ssub.s32 %s15, %s27
    %s29 = ssub.s32 %s16, %s23
    %s30 = sor.u32 %s28, %s29
    %p31 = scmp.eq.s32.totalorder %s30, 0
    %s33 = sadd.s32 %s32, 1
    %s34 = scalar_select %p31, %s32, %s33
    %p37 = pneg %p31
    %p38 = scmp.eq.s32.totalorder %s8, 1
    %p39 = por %p37, %p38
    %p40 = scmp.ne.s32.totalorder %s32, %s35
    %p41 = scmp.eq.s32.totalorder %s8, 0
    %p42 = por %p40, %p41
    %p43 = scmp.ne.s32.totalorder %s32, %s35
    %p44 = scmp.eq.s32.totalorder %s13, 1
    %p45 = por %p43, %p44
    %p46 = scmp.ne.s32.totalorder %s35, %s36
    %p47 = scmp.eq.s32.totalorder %s13, 0
    %p48 = por %p46, %p47
    %p49 = scmp.ne.s32.totalorder %s35, %s36
    %p50 = scmp.eq.s32.totalorder %s14, 1
    %p51 = por %p49, %p50
    %p53 = scmp.ne.s32.totalorder %s36, %s52
    %p54 = scmp.eq.s32.totalorder %s14, 0
    %p55 = por %p53, %p54
    %s56 = ssub.s32 %s15, %s27
    %p57 = scmp.eq.s32.totalorder %s56, 0
    %s59 = sadd.s32 %s58, 1
    %s60 = scalar_select %p57, %s58, %s59
    %p63 = pneg %p57
    %p64 = scmp.eq.s32.totalorder %s8, 1
    %p65 = por %p63, %p64
    %p66 = scmp.ne.s32.totalorder %s58, %s61
    %p67 = scmp.eq.s32.totalorder %s8, 0
    %p68 = por %p66, %p67
    %p69 = scmp.ne.s32.totalorder %s58, %s61
    %p70 = scmp.eq.s32.totalorder %s13, 1
    %p71 = por %p69, %p70
    %p72 = scmp.ne.s32.totalorder %s61, %s62
    %p73 = scmp.eq.s32.totalorder %s13, 0
    %p74 = por %p72, %p73
    %p75 = scmp.ne.s32.totalorder %s61, %s62
    %p76 = scmp.eq.s32.totalorder %s14, 1
    %p77 = por %p75, %p76
    %p79 = scmp.ne.s32.totalorder %s62, %s78
    %p80 = scmp.eq.s32.totalorder %s14, 0
    %p81 = por %p79, %p80
    %s82 = ssub.s32 %s15, %s27
    %s83 = ssub.s32 %s16, %s23
    %s84 = sor.u32 %s82, %s83
    %p85 = scmp.eq.s32.totalorder %s84, 0
    %s87 = sadd.s32 %s86, 1
    %s88 = scalar_select %p85, %s86, %s87
    %p91 = pneg %p85
    %p92 = scmp.eq.s32.totalorder %s8, 1
    %p93 = por %p91, %p92
    %p94 = scmp.ne.s32.totalorder %s86, %s89
    %p95 = scmp.eq.s32.totalorder %s8, 0
    %p96 = por %p94, %p95
    %p97 = scmp.ne.s32.totalorder %s86, %s89
    %p98 = scmp.eq.s32.totalorder %s13, 1
    %p99 = por %p97, %p98
    %p100 = scmp.ne.s32.totalorder %s89, %s90
    %p101 = scmp.eq.s32.totalorder %s13, 0
    %p102 = por %p100, %p101
    %p103 = scmp.ne.s32.totalorder %s89, %s90
    %p104 = scmp.eq.s32.totalorder %s14, 1
    %p105 = por %p103, %p104
    %p107 = scmp.ne.s32.totalorder %s90, %s106
    %p108 = scmp.eq.s32.totalorder %s14, 0
    %p109 = por %p107, %p108
    %p110 = scmp.le.s32.totalorder 1, %s8
    %p111 = scmp.lt.s32.totalorder %s8, 3
    %p112 = pnand %p110, %p111
    %p113 = pneg %p112
    // Predicated region
    $region9: #{unet_down.3} parent=5 // pred_check
      _
    $region10: #{unet_down.3} parent=5 // pred_check_branch
      %115 = sbr.rel (%p112) target = $region12
    $region11: #{unet_down.3} parent=5 // pred_region
      %s116 = ssub.s32 %s8, 1
    $region12: #{unet_down.3} parent=5 // pred_fallthru
      _
    %p117 = scmp.lt.s32.totalorder %s8, 2
    // Predicated region
    $region13: #{unet_down.3} parent=5 // pred_check
      %p118 = pneg %p117
    $region14: #{unet_down.3} parent=5 // pred_check_branch
      %120 = sbr.rel (%p118) target = $region16
    $region15: #{unet_down.3} parent=5 // pred_region
      // Predicated region
      $region17: #{unet_down.3} parent=15 // pred_check
        %p121 = pneg %p42
      $region18: #{unet_down.3} parent=15 // pred_check_branch
        %123 = sbr.rel (%p121) target = $region20
      $region19: #{unet_down.3} parent=15 // pred_region
        %s124 = smul.u32 8, %s16
        %p125 = scmp.lt.s32.totalorder %s15, 1
        %s126 = scalar_select %p125, %s15, 1
        %p127 = scmp.lt.s32.totalorder %s124, 7
        %s128 = scalar_select %p127, %s124, 7
        %s129 = smul.addr %s126, 8
        %s130 = sadd.s32 %s128, %s129
        %s131 = smul.addr %s130, 8
        %s132 = scalar_lea.vmem %s0, %s131
        %s133 = smul.u32 8, %s16
      $region20: #{unet_down.3} parent=15 // pred_fallthru
        _
      // Predicated region
      $region21: #{unet_down.3} parent=15 // pred_check
        %p134 = pneg %p68
      $region22: #{unet_down.3} parent=15 // pred_check_branch
        %136 = sbr.rel (%p134) target = $region24
      $region23: #{unet_down.3} parent=15 // pred_region
        %p137 = scmp.lt.s32.totalorder %s15, 1
        %s138 = scalar_select %p137, %s15, 1
        %s139 = smul.addr %s138, 2
        %s140 = scalar_lea.vmem %s1, %s139
      $region24: #{unet_down.3} parent=15 // pred_fallthru
        _
    $region16: #{unet_down.3} parent=5 // pred_fallthru
      _
    %p141 = scmp.le.s32.totalorder 1, %s8
    %p142 = scmp.lt.s32.totalorder %s8, 3
    %p143 = pnand %p141, %p142
    %p144 = pneg %p143
    // Predicated region
    $region25: #{unet_down.3} parent=5 // pred_check
      _
    $region26: #{unet_down.3} parent=5 // pred_check_branch
      %146 = sbr.rel (%p143) target = $region28
    $region27: #{unet_down.3} parent=5 // pred_region
      %s147 = ssub.s32 %s8, 1
      %s148 = smul.u32 8, %s18
      %p149 = scmp.lt.s32.totalorder %s17, 1
      %s150 = scalar_select %p149, %s17, 1
      %p151 = scmp.lt.s32.totalorder %s148, 7
      %s152 = scalar_select %p151, %s148, 7
      %s153 = smul.addr %s150, 8
      %s154 = sadd.s32 %s152, %s153
      %s155 = smul.addr %s154, 8
      %s156 = scalar_lea.vmem %s0, %s155
      %p157 = pneg %p48
      %p158 = pneg %p45
      %p159 = scmp.lt.s32.totalorder %s17, 1
      %s160 = scalar_select %p159, %s17, 1
      %s161 = smul.addr %s160, 2
      %s162 = scalar_lea.vmem %s1, %s161
      %p163 = pneg %p74
      %p164 = pneg %p71
      %p165 = pneg %p102
      %p166 = pneg %p99
      %s167 = smul.u32 8, %s18
      %p168 = scmp.lt.s32.totalorder %s17, 1
      %s169 = scalar_select %p168, %s17, 1
      %p170 = scmp.lt.s32.totalorder %s167, 7
      %s171 = scalar_select %p170, %s167, 7
      %s172 = smul.addr %s169, 8
      %s173 = sadd.s32 %s171, %s172
      %s174 = smul.addr %s173, 8
      %s175 = scalar_lea.vmem %s2, %s174
      %s176 = smul.u32 8, %s18
      %p177 = scmp.lt.s32.totalorder %s17, 1
      %s178 = scalar_select %p177, %s17, 1
      %p179 = scmp.lt.s32.totalorder %s176, 7
      %s180 = scalar_select %p179, %s176, 7
      %s181 = smul.addr %s178, 8
      %s182 = sadd.s32 %s180, %s181
      %s183 = smul.addr %s182, 8
      %s184 = scalar_lea.vmem %s0, %s183
      %s185 = smul.u32 8, %s18
      %p186 = scmp.lt.s32.totalorder %s17, 1
      %s187 = scalar_select %p186, %s17, 1
      %s188 = smul.addr %s187, 2
      %s189 = scalar_lea.vmem %s1, %s188
      %s190 = smul.u32 8, %s18
      %p191 = scmp.lt.s32.totalorder %s17, 1
      %s192 = scalar_select %p191, %s17, 1
      %p193 = scmp.lt.s32.totalorder %s190, 7
      %s194 = scalar_select %p193, %s190, 7
      %s195 = smul.addr %s192, 8
      %s196 = sadd.s32 %s194, %s195
      %s197 = smul.addr %s196, 8
      %s198 = scalar_lea.vmem %s2, %s197
      %s199 = smul.u32 8, %s18
      %v200 = vld [vmem:[%s184] sm:$0xff]
      %v201 = vld [vmem:[%s184 + $0x8] sm:$0xff]
      %v202 = vld [vmem:[%s184 + $0x10] sm:$0xff]
      %v203 = vld [vmem:[%s184 + $0x18] sm:$0xff]
      %v204 = vld [vmem:[%s184 + $0x20] sm:$0xff]
      %v205 = vld [vmem:[%s184 + $0x28] sm:$0xff]
      %v206 = vld [vmem:[%s184 + $0x30] sm:$0xff]
      %v207 = vld [vmem:[%s184 + $0x38] sm:$0xff]
      %v208 = vld [vmem:[%s189] sm:$0x1]
      %v209 = vmul.f32 %v208, 0.015625
      %v210 = vld [vmem:[%s189 + $0x1] sm:$0x1]
      %v211 = vmul.f32 %v210, 0.015625
      %v212 = vmul.f32 %v209, %v209
      %v213 = vsub.f32 %v211, %v212
      %v214 = vmax.f32 %v213, 0.0
      %v215 = vlaneseq
      %v216 = vshrl.u32 %v215, 7
      %v217 = vsub.s32 0, %v216
      %v218 = vrot.slane %v209, %v217
      %v219 = vsub.f32 %v200, %v218
      %v220 = vsub.f32 %v201, %v218
      %v221 = vsub.f32 %v202, %v218
      %v222 = vsub.f32 %v203, %v218
      %v223 = vsub.f32 %v204, %v218
      %v224 = vsub.f32 %v205, %v218
      %v225 = vsub.f32 %v206, %v218
      %v226 = vsub.f32 %v207, %v218
      %v227 = vadd.f32 %v214, 1e-05
      %v228 = vrsqrt.pop %v227
      %v229 = vlaneseq
      %v230 = vshrl.u32 %v229, 7
      %v231 = vsub.s32 0, %v230
      %v232 = vrot.slane %v228, %v231
      %v233 = vmul.f32 %v219, %v232
      %v234 = vmul.f32 %v220, %v232
      %v235 = vmul.f32 %v221, %v232
      %v236 = vmul.f32 %v222, %v232
      %v237 = vmul.f32 %v223, %v232
      %v238 = vmul.f32 %v224, %v232
      %v239 = vmul.f32 %v225, %v232
      %v240 = vmul.f32 %v226, %v232
      %vm241 = vcmp.ge.f32.partialorder %v233, 0.0
      %vm242 = vcmp.ge.f32.partialorder %v234, 0.0
      %vm243 = vcmp.ge.f32.partialorder %v235, 0.0
      %vm244 = vcmp.ge.f32.partialorder %v236, 0.0
      %vm245 = vcmp.ge.f32.partialorder %v237, 0.0
      %vm246 = vcmp.ge.f32.partialorder %v238, 0.0
      %vm247 = vcmp.ge.f32.partialorder %v239, 0.0
      %vm248 = vcmp.ge.f32.partialorder %v240, 0.0
      %v249 = vmul.f32 %v233, 0.2
      %v250 = vmul.f32 %v234, 0.2
      %v251 = vmul.f32 %v235, 0.2
      %v252 = vmul.f32 %v236, 0.2
      %v253 = vmul.f32 %v237, 0.2
      %v254 = vmul.f32 %v238, 0.2
      %v255 = vmul.f32 %v239, 0.2
      %v256 = vmul.f32 %v240, 0.2
      %v257 = vsel %vm241, %v233, %v249
      %v258 = vsel %vm242, %v234, %v250
      %v259 = vsel %vm243, %v235, %v251
      %v260 = vsel %vm244, %v236, %v252
      %v261 = vsel %vm245, %v237, %v253
      %v262 = vsel %vm246, %v238, %v254
      %v263 = vsel %vm247, %v239, %v255
      %v264 = vsel %vm248, %v240, %v256
      %265 = vst [vmem:[%s198] sm:$0xff] %v257
      %266 = vst [vmem:[%s198 + $0x8] sm:$0xff] %v258
      %267 = vst [vmem:[%s198 + $0x10] sm:$0xff] %v259
      %268 = vst [vmem:[%s198 + $0x18] sm:$0xff] %v260
      %269 = vst [vmem:[%s198 + $0x20] sm:$0xff] %v261
      %270 = vst [vmem:[%s198 + $0x28] sm:$0xff] %v262
      %271 = vst [vmem:[%s198 + $0x30] sm:$0xff] %v263
      %272 = vst [vmem:[%s198 + $0x38] sm:$0xff] %v264
      %s273 = smul.u32 8, %s18
      %p274 = scmp.lt.s32.totalorder %s17, 1
      %s275 = scalar_select %p274, %s17, 1
      %p276 = scmp.lt.s32.totalorder %s273, 7
      %s277 = scalar_select %p276, %s273, 7
      %s278 = smul.addr %s275, 8
      %s279 = sadd.s32 %s277, %s278
      %s280 = smul.addr %s279, 8
      %s281 = scalar_lea.vmem %s2, %s280
      // Predicated region
      $region29: #{unet_down.3} parent=27 // pred_check
        %p282 = pneg %p99
      $region30: #{unet_down.3} parent=27 // pred_check_branch
        %284 = sbr.rel (%p282) target = $region32
      $region31: #{unet_down.3} parent=27 // pred_region
        %s285 = smul.u32 8, %s18
      $region32: #{unet_down.3} parent=27 // pred_fallthru
        _
    $region28: #{unet_down.3} parent=5 // pred_fallthru
      _
    %p286 = scmp.le.s32.totalorder 2, %s8
    // Predicated region
    $region33: #{unet_down.3} parent=5 // pred_check
      %p287 = pneg %p286
    $region34: #{unet_down.3} parent=5 // pred_check_branch
      %289 = sbr.rel (%p287) target = $region36
    $region35: #{unet_down.3} parent=5 // pred_region
      %s290 = ssub.s32 %s8, 2
      // Predicated region
      $region37: #{unet_down.3} parent=35 // pred_check
        %p291 = pneg %p105
      $region38: #{unet_down.3} parent=35 // pred_check_branch
        %293 = sbr.rel (%p291) target = $region40
      $region39: #{unet_down.3} parent=35 // pred_region
        %s294 = smul.u32 8, %s20
        %p295 = scmp.lt.s32.totalorder %s19, 1
        %s296 = scalar_select %p295, %s19, 1
        %p297 = scmp.lt.s32.totalorder %s294, 7
        %s298 = scalar_select %p297, %s294, 7
        %s299 = smul.addr %s296, 8
        %s300 = sadd.s32 %s298, %s299
        %s301 = smul.addr %s300, 8
        %s302 = scalar_lea.vmem %s2, %s301
      $region40: #{unet_down.3} parent=35 // pred_fallthru
        _
    $region36: #{unet_down.3} parent=5 // pred_fallthru
      _
  $region6: #{unet_down.3} parent=0 // loop_footer
    %s12 = sadd.s32 1, %s8
  $region7: #{unet_down.3} parent=0 // loop_footer_branch
    %7 = sbr.rel target = $region3
  $region8: #{unet_down.3} parent=0 // loop_exit
    _

// kernel: unet_down.4
$region0: #{unet_down.4}
  #allocation0 [shape = 'u32[]', space=smem, size = 0x4, offset = 0x4, fixed_abs, tag = 'smem constant byte address 0x4 - core index']
  #allocation1 [shape = 'u32[144,128]{1,0:T(1,128)}', space=vmem, size = 0x12000, scoped, tag = 'internal scratch']
  #allocation2 [shape = 'f32[64,128]{1,0:T(8,128)}', space=vmem, size = 0x8000, scoped, tag = 'scratch operand']
  #allocation3 [shape = 'u32[2048]{0}', space=vmem, size = 0x2000, scoped, tag = 'scoped memory for unet_down.4']
  #allocation4 [shape = 'u32[2048]{0}', space=vmem, size = 0x2000, scoped, tag = 'scoped memory for unet_down.4']
  #allocation5 [shape = 'u32[2048]{0}', space=vmem, size = 0x2000, scoped, tag = 'scoped memory for unet_down.4']
  #allocation6 [shape = 'u32[2048]{0}', space=vmem, size = 0x2000, scoped, tag = 'scoped memory for unet_down.4']
  #allocation7 [shape = 'u32[2048]{0}', space=vmem, size = 0x2000, scoped, tag = 'scoped memory for unet_down.4']
  %s0 = inlined_call_operand.vmem [shape: f32[128,128], index: 0, kind: input, shape index: {}]
  %s1 = inlined_call_operand.vmem [shape: f32[2,64,64], index: 1, kind: input, shape index: {}]
  %s2 = inlined_call_operand.<no memory space> [shape: f32[], index: 2, kind: input, shape index: {}]
  %s3 = inlined_call_operand.vmem [shape: f32[2,64,128], index: 3, kind: output, shape index: {0}]
  %s4 = inlined_call_operand.vmem [shape: f32[2,1,2,128], index: 4, kind: output, shape index: {1}]
  %5 = xla_tuple %s3, %s4
  %s6 = sld [smem:[#allocation0]]
  $region57: #{unet_down.4} parent=0
    _
  %s8 = ssub.s32 1, %s6
  %s9 = scalar_select 0, %s8, %s6
  %v10 = vstv %s2
  loop: start=0, step=1, limit=4
  $region2: #{unet_down.4} parent=0 // loop_pre_header
    _
  $region3: #{unet_down.4} parent=0 // loop_header
    %s12 = sphi 0, %s16
    %p13 = scmp.ge.s32.totalorder %s12, 4
    %s19 = sphi 0, %s38
    %s20 = sphi 0, %s34
    %s21 = sphi 0, %s30
    %s22 = sphi 0, %s19
    %s23 = sphi 0, %s20
    %s24 = sphi 0, %s21
    %s25 = sphi 0, %s22
    %s26 = sphi 0, %s23
    %s27 = sphi 0, %s24
    %s45 = sphi 0, %s47
    %s48 = sphi 0, %s45
    %s49 = sphi 0, %s48
    %s65 = sphi 0, %s49
    %s71 = sphi 0, %s73
    %s74 = sphi 0, %s71
    %s75 = sphi 0, %s74
    %s91 = sphi 0, %s75
    %s99 = sphi 0, %s101
    %s102 = sphi 0, %s99
    %s103 = sphi 0, %s102
    %s119 = sphi 0, %s103
    %s127 = sphi 0, %s129
    %s130 = sphi 0, %s127
    %s131 = sphi 0, %s130
    %s147 = sphi 0, %s131
  $region4: #{unet_down.4} parent=0 // loop_header_branch
    %15 = sbr.rel (%p13) target = $region8
  $region5: #{unet_down.4} parent=0 // loop_body
    %s17 = ssub.s32 %s12, 1
    %s18 = ssub.s32 %s12, 2
    %s28 = sadd.s32 1, %s21
    %p29 = scmp.ge.s32.totalorder %s28, 1
    %s30 = scalar_select %p29, 0, %s28
    %s31 = sadd.s32 1, %s20
    %s32 = scalar_select %p29, %s31, %s20
    %p33 = scmp.ge.s32.totalorder %s32, 1
    %s34 = scalar_select %p33, 0, %s32
    %s35 = sadd.s32 1, %s19
    %s36 = scalar_select %p33, %s35, %s19
    %p37 = scmp.ge.s32.totalorder %s36, 2
    %s38 = scalar_select %p37, 0, %s36
    %s39 = ssub.s32 %s19, %s38
    %s40 = ssub.s32 %s20, %s34
    %s41 = sor.u32 %s39, %s40
    %s42 = ssub.s32 %s21, %s30
    %s43 = sor.u32 %s41, %s42
    %p44 = scmp.eq.s32.totalorder %s43, 0
    %s46 = sadd.s32 %s45, 1
    %s47 = scalar_select %p44, %s45, %s46
    %p50 = pneg %p44
    %p51 = scmp.eq.s32.totalorder %s12, 1
    %p52 = por %p50, %p51
    %p53 = scmp.ne.s32.totalorder %s45, %s48
    %p54 = scmp.eq.s32.totalorder %s12, 0
    %p55 = por %p53, %p54
    %p56 = scmp.ne.s32.totalorder %s45, %s48
    %p57 = scmp.eq.s32.totalorder %s17, 1
    %p58 = por %p56, %p57
    %p59 = scmp.ne.s32.totalorder %s48, %s49
    %p60 = scmp.eq.s32.totalorder %s17, 0
    %p61 = por %p59, %p60
    %p62 = scmp.ne.s32.totalorder %s48, %s49
    %p63 = scmp.eq.s32.totalorder %s18, 1
    %p64 = por %p62, %p63
    %p66 = scmp.ne.s32.totalorder %s49, %s65
    %p67 = scmp.eq.s32.totalorder %s18, 0
    %p68 = por %p66, %p67
    %s69 = ssub.s32 %s21, %s30
    %p70 = scmp.eq.s32.totalorder %s69, 0
    %s72 = sadd.s32 %s71, 1
    %s73 = scalar_select %p70, %s71, %s72
    %p76 = pneg %p70
    %p77 = scmp.eq.s32.totalorder %s12, 1
    %p78 = por %p76, %p77
    %p79 = scmp.ne.s32.totalorder %s71, %s74
    %p80 = scmp.eq.s32.totalorder %s12, 0
    %p81 = por %p79, %p80
    %p82 = scmp.ne.s32.totalorder %s71, %s74
    %p83 = scmp.eq.s32.totalorder %s17, 1
    %p84 = por %p82, %p83
    %p85 = scmp.ne.s32.totalorder %s74, %s75
    %p86 = scmp.eq.s32.totalorder %s17, 0
    %p87 = por %p85, %p86
    %p88 = scmp.ne.s32.totalorder %s74, %s75
    %p89 = scmp.eq.s32.totalorder %s18, 1
    %p90 = por %p88, %p89
    %p92 = scmp.ne.s32.totalorder %s75, %s91
    %p93 = scmp.eq.s32.totalorder %s18, 0
    %p94 = por %p92, %p93
    %s95 = ssub.s32 %s19, %s38
    %s96 = ssub.s32 %s20, %s34
    %s97 = sor.u32 %s95, %s96
    %p98 = scmp.eq.s32.totalorder %s97, 0
    %s100 = sadd.s32 %s99, 1
    %s101 = scalar_select %p98, %s99, %s100
    %p104 = pneg %p98
    %p105 = scmp.eq.s32.totalorder %s12, 1
    %p106 = por %p104, %p105
    %p107 = scmp.ne.s32.totalorder %s99, %s102
    %p108 = scmp.eq.s32.totalorder %s12, 0
    %p109 = por %p107, %p108
    %p110 = scmp.ne.s32.totalorder %s99, %s102
    %p111 = scmp.eq.s32.totalorder %s17, 1
    %p112 = por %p110, %p111
    %p113 = scmp.ne.s32.totalorder %s102, %s103
    %p114 = scmp.eq.s32.totalorder %s17, 0
    %p115 = por %p113, %p114
    %p116 = scmp.ne.s32.totalorder %s102, %s103
    %p117 = scmp.eq.s32.totalorder %s18, 1
    %p118 = por %p116, %p117
    %p120 = scmp.ne.s32.totalorder %s103, %s119
    %p121 = scmp.eq.s32.totalorder %s18, 0
    %p122 = por %p120, %p121
    %s123 = ssub.s32 %s19, %s38
    %s124 = ssub.s32 %s20, %s34
    %s125 = sor.u32 %s123, %s124
    %p126 = scmp.eq.s32.totalorder %s125, 0
    %s128 = sadd.s32 %s127, 1
    %s129 = scalar_select %p126, %s127, %s128
    %p132 = pneg %p126
    %p133 = scmp.eq.s32.totalorder %s12, 1
    %p134 = por %p132, %p133
    %p135 = scmp.ne.s32.totalorder %s127, %s130
    %p136 = scmp.eq.s32.totalorder %s12, 0
    %p137 = por %p135, %p136
    %p138 = scmp.ne.s32.totalorder %s127, %s130
    %p139 = scmp.eq.s32.totalorder %s17, 1
    %p140 = por %p138, %p139
    %p141 = scmp.ne.s32.totalorder %s130, %s131
    %p142 = scmp.eq.s32.totalorder %s17, 0
    %p143 = por %p141, %p142
    %p144 = scmp.ne.s32.totalorder %s130, %s131
    %p145 = scmp.eq.s32.totalorder %s18, 1
    %p146 = por %p144, %p145
    %p148 = scmp.ne.s32.totalorder %s131, %s147
    %p149 = scmp.eq.s32.totalorder %s18, 0
    %p150 = por %p148, %p149
    %p151 = scmp.le.s32.totalorder 1, %s12
    %p152 = scmp.lt.s32.totalorder %s12, 3
    %p153 = pnand %p151, %p152
    %p154 = pneg %p153
    // Predicated region
    $region9: #{unet_down.4} parent=5 // pred_check
      _
    $region10: #{unet_down.4} parent=5 // pred_check_branch
      %156 = sbr.rel (%p153) target = $region12
    $region11: #{unet_down.4} parent=5 // pred_region
      %s157 = ssub.s32 %s12, 1
      // Predicated region
      $region13: #{unet_down.4} parent=11 // pred_check
        %p158 = pneg %p87
      $region14: #{unet_down.4} parent=11 // pred_check_branch
        %160 = sbr.rel (%p158) target = $region16
      $region15: #{unet_down.4} parent=11 // pred_region
        %s161 = smul.u32 16, %s24
        %p162 = scmp.lt.s32.totalorder %s161, 15
        %s163 = scalar_select %p162, %s161, 15
        %s164 = smul.addr %s163, 8
        %s165 = scalar_lea.vmem %s0, %s164
        %s166 = smul.u32 16, %s24
      $region16: #{unet_down.4} parent=11 // pred_fallthru
        _
    $region12: #{unet_down.4} parent=5 // pred_fallthru
      _
    %p167 = scmp.lt.s32.totalorder %s12, 2
    // Predicated region
    $region17: #{unet_down.4} parent=5 // pred_check
      %p168 = pneg %p167
    $region18: #{unet_down.4} parent=5 // pred_check_branch
      %170 = sbr.rel (%p168) target = $region20
    $region19: #{unet_down.4} parent=5 // pred_region
      // Predicated region
      $region21: #{unet_down.4} parent=19 // pred_check
        %p171 = pneg %p55
      $region22: #{unet_down.4} parent=19 // pred_check_branch
        %173 = sbr.rel (%p171) target = $region24
      $region23: #{unet_down.4} parent=19 // pred_region
        %s174 = smul.u32 8, %s20
        %s175 = ssub.s32 1, %s21
        %s176 = smul.u32 1024, %s175
        %p177 = scmp.lt.s32.totalorder %s19, 1
        %s178 = scalar_select %p177, %s19, 1
        %p179 = scmp.lt.s32.totalorder %s174, 7
        %s180 = scalar_select %p179, %s174, 7
        %p181 = scmp.lt.s32.totalorder %s21, 0
        %s182 = scalar_select %p181, %s21, 0
        %s183 = sadd.s32 %s182, %s180
        %s184 = smul.addr %s178, 8
        %s185 = sadd.s32 %s183, %s184
        %s186 = smul.addr %s185, 8
        %s187 = scalar_lea.vmem %s1, %s186
        %s188 = smul.u32 8, %s20
        %s189 = ssub.s32 1, %s21
        %s190 = smul.u32 1024, %s189
      $region24: #{unet_down.4} parent=19 // pred_fallthru
        _
    $region20: #{unet_down.4} parent=5 // pred_fallthru
      _
    %p191 = scmp.le.s32.totalorder 1, %s12
    %p192 = scmp.lt.s32.totalorder %s12, 3
    %p193 = pnand %p191, %p192
    %p194 = pneg %p193
    // Predicated region
    $region25: #{unet_down.4} parent=5 // pred_check
      _
    $region26: #{unet_down.4} parent=5 // pred_check_branch
      %196 = sbr.rel (%p193) target = $region28
    $region27: #{unet_down.4} parent=5 // pred_region
      #allocation8 [shape = 'u8[32768]{0}', space=vmem, size = 0x8000, dematerialized = true, scoped, tag = 'FusionAdapter Buffer %fusion.1 = f32[2,64,128]{2,1,0:T(8,128)} fusion(%param_1.1, %param_2), kind=kLoop, calls=%fused_computation.2.clone, metadata={op_name="jit(unet_down)/jit(_pad)/pad" stack_frame_id=12}']
      %s197 = ssub.s32 %s12, 1
      %s198 = smul.u32 8, %s23
      %s199 = ssub.s32 1, %s24
      %s200 = smul.u32 1024, %s199
      %p201 = scmp.lt.s32.totalorder %s22, 1
      %s202 = scalar_select %p201, %s22, 1
      %p203 = scmp.lt.s32.totalorder %s198, 7
      %s204 = scalar_select %p203, %s198, 7
      %p205 = scmp.lt.s32.totalorder %s24, 0
      %s206 = scalar_select %p205, %s24, 0
      %s207 = sadd.s32 %s206, %s204
      %s208 = smul.addr %s202, 8
      %s209 = sadd.s32 %s207, %s208
      %s210 = smul.addr %s209, 8
      %s211 = scalar_lea.vmem %s1, %s210
      %p212 = pneg %p61
      %p213 = pneg %p58
      %s214 = smul.u32 16, %s24
      %p215 = scmp.lt.s32.totalorder %s214, 15
      %s216 = scalar_select %p215, %s214, 15
      %s217 = smul.addr %s216, 8
      %s218 = scalar_lea.vmem %s0, %s217
      %p219 = pneg %p87
      %p220 = pneg %p84
      %p221 = pneg %p115
      %p222 = pneg %p112
      %s223 = smul.u32 8, %s23
      %p224 = scmp.lt.s32.totalorder %s22, 1
      %s225 = scalar_select %p224, %s22, 1
      %p226 = scmp.lt.s32.totalorder %s223, 7
      %s227 = scalar_select %p226, %s223, 7
      %s228 = smul.addr %s225, 8
      %s229 = sadd.s32 %s227, %s228
      %s230 = smul.addr %s229, 8
      %s231 = scalar_lea.vmem %s3, %s230
      %p232 = pneg %p143
      %p233 = pneg %p140
      %p234 = scmp.lt.s32.totalorder %s22, 1
      %s235 = scalar_select %p234, %s22, 1
      %p236 = scmp.lt.s32.totalorder %s23, 0
      %s237 = scalar_select %p236, %s23, 0
      %s238 = sadd.s32 %s237, %s235
      %s239 = smul.addr %s238, 2
      %s240 = scalar_lea.vmem %s4, %s239
      %s241 = smul.u32 8, %s23
      %s242 = ssub.s32 1, %s24
      %s243 = smul.u32 1024, %s242
      %p244 = scmp.lt.s32.totalorder %s22, 1
      %s245 = scalar_select %p244, %s22, 1
      %p246 = scmp.lt.s32.totalorder %s241, 7
      %s247 = scalar_select %p246, %s241, 7
      %p248 = scmp.lt.s32.totalorder %s24, 0
      %s249 = scalar_select %p248, %s24, 0
      %s250 = sadd.s32 %s249, %s247
      %s251 = smul.addr %s245, 8
      %s252 = sadd.s32 %s250, %s251
      %s253 = smul.addr %s252, 8
      %s254 = scalar_lea.vmem %s1, %s253
      %s255 = smul.u32 8, %s23
      %s256 = ssub.s32 1, %s24
      %s257 = smul.u32 1024, %s256
      %s258 = smul.u32 16, %s24
      %p259 = scmp.lt.s32.totalorder %s258, 15
      %s260 = scalar_select %p259, %s258, 15
      %s261 = smul.addr %s260, 8
      %s262 = scalar_lea.vmem %s0, %s261
      %s263 = smul.u32 16, %s24
      %s264 = smul.u32 8, %s23
      %p265 = scmp.lt.s32.totalorder %s22, 1
      %s266 = scalar_select %p265, %s22, 1
      %p267 = scmp.lt.s32.totalorder %s264, 7
      %s268 = scalar_select %p267, %s264, 7
      %s269 = smul.addr %s266, 8
      %s270 = sadd.s32 %s268, %s269
      %s271 = smul.addr %s270, 8
      %s272 = scalar_lea.vmem %s3, %s271
      %s273 = smul.u32 8, %s23
      %p274 = scmp.lt.s32.totalorder %s22, 1
      %s275 = scalar_select %p274, %s22, 1
      %p276 = scmp.lt.s32.totalorder %s23, 0
      %s277 = scalar_select %p276, %s23, 0
      %s278 = sadd.s32 %s277, %s275
      %s279 = smul.addr %s278, 2
      %s280 = scalar_lea.vmem %s4, %s279
      %s281 = ssub.s32 0, %s24
      %p282 = scmp.lt.s32.totalorder %s281, 0
      %s283 = scalar_select %p282, 0, 255
      %v284 = vld [vmem:[%s254] sm:%s283]
      %s285 = ssub.s32 0, %s24
      %v286 = vstv %s285
      %vm287 = vcmp.lt.s32.totalorder %v286, 0
      %v288 = vsel %vm287, %v10, %v284
      %s289 = smul.addr %s24, 128
      %v290 = vlaneseq
      %v291 = vand.u32 %v290, 127
      %v292 = vstv %s289
      %v293 = vadd.s32 %v291, %v292
      %vm294 = vcmp.lt.s32.totalorder %v293, 64
      %v295 = vsel %vm294, %v288, %v10
      %s297 = ssub.s32 256, 1
      %298 = vst [vmem:[#allocation8] sm:%s297] %v295
      %s299 = scalar_lea.vmem %s254, 8
      %s300 = ssub.s32 0, %s24
      %p301 = scmp.lt.s32.totalorder %s300, 0
      %s302 = scalar_select %p301, 0, 255
      %v303 = vld [vmem:[%s299] sm:%s302]
      %s304 = ssub.s32 0, %s24
      %v305 = vstv %s304
      %vm306 = vcmp.lt.s32.totalorder %v305, 0
      %v307 = vsel %vm306, %v10, %v303
      %s308 = smul.addr %s24, 128
      %v309 = vlaneseq
      %v310 = vand.u32 %v309, 127
      %v311 = vstv %s308
      %v312 = vadd.s32 %v310, %v311
      %vm313 = vcmp.lt.s32.totalorder %v312, 64
      %v314 = vsel %vm313, %v307, %v10
      %s315 = scalar_lea.vmem [#allocation8], 8
      %s317 = ssub.s32 256, 1
      %318 = vst [vmem:[%s315] sm:%s317] %v314
      %s319 = scalar_lea.vmem %s254, 16
      %s320 = ssub.s32 0, %s24
      %p321 = scmp.lt.s32.totalorder %s320, 0
      %s322 = scalar_select %p321, 0, 255
      %v323 = vld [vmem:[%s319] sm:%s322]
      %s324 = ssub.s32 0, %s24
      %v325 = vstv %s324
      %vm326 = vcmp.lt.s32.totalorder %v325, 0
      %v327 = vsel %vm326, %v10, %v323
      %s328 = smul.addr %s24, 128
      %v329 = vlaneseq
      %v330 = vand.u32 %v329, 127
      %v331 = vstv %s328
      %v332 = vadd.s32 %v330, %v331
      %vm333 = vcmp.lt.s32.totalorder %v332, 64
      %v334 = vsel %vm333, %v327, %v10
      %s335 = scalar_lea.vmem [#allocation8], 16
      %s337 = ssub.s32 256, 1
      %338 = vst [vmem:[%s335] sm:%s337] %v334
      %s339 = scalar_lea.vmem %s254, 24
      %s340 = ssub.s32 0, %s24
      %p341 = scmp.lt.s32.totalorder %s340, 0
      %s342 = scalar_select %p341, 0, 255
      %v343 = vld [vmem:[%s339] sm:%s342]
      %s344 = ssub.s32 0, %s24
      %v345 = vstv %s344
      %vm346 = vcmp.lt.s32.totalorder %v345, 0
      %v347 = vsel %vm346, %v10, %v343
      %s348 = smul.addr %s24, 128
      %v349 = vlaneseq
      %v350 = vand.u32 %v349, 127
      %v351 = vstv %s348
      %v352 = vadd.s32 %v350, %v351
      %vm353 = vcmp.lt.s32.totalorder %v352, 64
      %v354 = vsel %vm353, %v347, %v10
      %s355 = scalar_lea.vmem [#allocation8], 24
      %s357 = ssub.s32 256, 1
      %358 = vst [vmem:[%s355] sm:%s357] %v354
      %s359 = scalar_lea.vmem %s254, 32
      %s360 = ssub.s32 0, %s24
      %p361 = scmp.lt.s32.totalorder %s360, 0
      %s362 = scalar_select %p361, 0, 255
      %v363 = vld [vmem:[%s359] sm:%s362]
      %s364 = ssub.s32 0, %s24
      %v365 = vstv %s364
      %vm366 = vcmp.lt.s32.totalorder %v365, 0
      %v367 = vsel %vm366, %v10, %v363
      %s368 = smul.addr %s24, 128
      %v369 = vlaneseq
      %v370 = vand.u32 %v369, 127
      %v371 = vstv %s368
      %v372 = vadd.s32 %v370, %v371
      %vm373 = vcmp.lt.s32.totalorder %v372, 64
      %v374 = vsel %vm373, %v367, %v10
      %s375 = scalar_lea.vmem [#allocation8], 32
      %s377 = ssub.s32 256, 1
      %378 = vst [vmem:[%s375] sm:%s377] %v374
      %s379 = scalar_lea.vmem %s254, 40
      %s380 = ssub.s32 0, %s24
      %p381 = scmp.lt.s32.totalorder %s380, 0
      %s382 = scalar_select %p381, 0, 255
      %v383 = vld [vmem:[%s379] sm:%s382]
      %s384 = ssub.s32 0, %s24
      %v385 = vstv %s384
      %vm386 = vcmp.lt.s32.totalorder %v385, 0
      %v387 = vsel %vm386, %v10, %v383
      %s388 = smul.addr %s24, 128
      %v389 = vlaneseq
      %v390 = vand.u32 %v389, 127
      %v391 = vstv %s388
      %v392 = vadd.s32 %v390, %v391
      %vm393 = vcmp.lt.s32.totalorder %v392, 64
      %v394 = vsel %vm393, %v387, %v10
      %s395 = scalar_lea.vmem [#allocation8], 40
      %s397 = ssub.s32 256, 1
      %398 = vst [vmem:[%s395] sm:%s397] %v394
      %s399 = scalar_lea.vmem %s254, 48
      %s400 = ssub.s32 0, %s24
      %p401 = scmp.lt.s32.totalorder %s400, 0
      %s402 = scalar_select %p401, 0, 255
      %v403 = vld [vmem:[%s399] sm:%s402]
      %s404 = ssub.s32 0, %s24
      %v405 = vstv %s404
      %vm406 = vcmp.lt.s32.totalorder %v405, 0
      %v407 = vsel %vm406, %v10, %v403
      %s408 = smul.addr %s24, 128
      %v409 = vlaneseq
      %v410 = vand.u32 %v409, 127
      %v411 = vstv %s408
      %v412 = vadd.s32 %v410, %v411
      %vm413 = vcmp.lt.s32.totalorder %v412, 64
      %v414 = vsel %vm413, %v407, %v10
      %s415 = scalar_lea.vmem [#allocation8], 48
      %s417 = ssub.s32 256, 1
      %418 = vst [vmem:[%s415] sm:%s417] %v414
      %s419 = scalar_lea.vmem %s254, 56
      %s420 = ssub.s32 0, %s24
      %p421 = scmp.lt.s32.totalorder %s420, 0
      %s422 = scalar_select %p421, 0, 255
      %v423 = vld [vmem:[%s419] sm:%s422]
      %s424 = ssub.s32 0, %s24
      %v425 = vstv %s424
      %vm426 = vcmp.lt.s32.totalorder %v425, 0
      %v427 = vsel %vm426, %v10, %v423
      %s428 = smul.addr %s24, 128
      %v429 = vlaneseq
      %v430 = vand.u32 %v429, 127
      %v431 = vstv %s428
      %v432 = vadd.s32 %v430, %v431
      %vm433 = vcmp.lt.s32.totalorder %v432, 64
      %v434 = vsel %vm433, %v427, %v10
      %s435 = scalar_lea.vmem [#allocation8], 56
      %s437 = ssub.s32 256, 1
      %438 = vst [vmem:[%s435] sm:%s437] %v434
      %p439 = scmp.eq.s32.totalorder %s24, 0
      // Predicated region
      $region29: #{unet_down.4} parent=27 // pred_check
        %p440 = pneg %p439
      $region30: #{unet_down.4} parent=27 // pred_check_branch
        %442 = sbr.rel (%p440) target = $region32
      $region31: #{unet_down.4} parent=27 // pred_region
        %443 = vst [vmem:[#allocation2] sm:$0xff] 0.0
        %444 = vst [vmem:[#allocation2 + $0x8] sm:$0xff] 0.0
        %445 = vst [vmem:[#allocation2 + $0x10] sm:$0xff] 0.0
        %446 = vst [vmem:[#allocation2 + $0x18] sm:$0xff] 0.0
        %447 = vst [vmem:[#allocation2 + $0x20] sm:$0xff] 0.0
        %448 = vst [vmem:[#allocation2 + $0x28] sm:$0xff] 0.0
        %449 = vst [vmem:[#allocation2 + $0x30] sm:$0xff] 0.0
        %450 = vst [vmem:[#allocation2 + $0x38] sm:$0xff] 0.0
      $region32: #{unet_down.4} parent=27 // pred_fallthru
        _
      %v451 = vld [vmem:[#allocation2] sm:$0xff]
      %v452 = vld [vmem:[#allocation2 + $0x8] sm:$0xff]
      %v453 = vld [vmem:[#allocation2 + $0x10] sm:$0xff]
      %v454 = vld [vmem:[#allocation2 + $0x18] sm:$0xff]
      %v455 = vld [vmem:[#allocation2 + $0x20] sm:$0xff]
      %v456 = vld [vmem:[#allocation2 + $0x28] sm:$0xff]
      %v457 = vld [vmem:[#allocation2 + $0x30] sm:$0xff]
      %v458 = vld [vmem:[#allocation2 + $0x38] sm:$0xff]
      %v459 = vld [vmem:[#allocation8] sm:$0xff]
      %v460 = vld [vmem:[#allocation8 + $0x8] sm:$0xff]
      %v461 = vld [vmem:[#allocation8 + $0x10] sm:$0xff]
      %v462 = vld [vmem:[#allocation8 + $0x18] sm:$0xff]
      %v463 = vld [vmem:[#allocation8 + $0x20] sm:$0xff]
      %v464 = vld [vmem:[#allocation8 + $0x28] sm:$0xff]
      %v465 = vld [vmem:[#allocation8 + $0x30] sm:$0xff]
      %v466 = vld [vmem:[#allocation8 + $0x38] sm:$0xff]
      %v467 = vld [vmem:[%s262] sm:$0xff]
      %v468 = vld [vmem:[%s262 + $0x8] sm:$0xff]
      %v469 = vld [vmem:[%s262 + $0x10] sm:$0xff]
      %v470 = vld [vmem:[%s262 + $0x18] sm:$0xff]
      %v471 = vld [vmem:[%s262 + $0x20] sm:$0xff]
      %v472 = vld [vmem:[%s262 + $0x28] sm:$0xff]
      %v473 = vld [vmem:[%s262 + $0x30] sm:$0xff]
      %v474 = vld [vmem:[%s262 + $0x38] sm:$0xff]
      %v475 = vld [vmem:[%s262 + $0x40] sm:$0xff]
      %v476 = vld [vmem:[%s262 + $0x48] sm:$0xff]
      %v477 = vld [vmem:[%s262 + $0x50] sm:$0xff]
      %v478 = vld [vmem:[%s262 + $0x58] sm:$0xff]
      %v479 = vld [vmem:[%s262 + $0x60] sm:$0xff]
      %v480 = vld [vmem:[%s262 + $0x68] sm:$0xff]
      %v481 = vld [vmem:[%s262 + $0x70] sm:$0xff]
      %v482 = vld [vmem:[%s262 + $0x78] sm:$0xff]
      %483 = vmatprep.subr.mxu0 0.0
      %484 = vmatpush1.msra.mxu0 %v482
      %485 = vmatprep.subr.mxu0 0.0
      %486 = vmatpush1.msra.mxu0 %v481
      %487 = vmatprep.subr.mxu0 0.0
      %488 = vmatpush1.msra.mxu0 %v480
      %489 = vmatprep.subr.mxu0 0.0
      %490 = vmatpush1.msra.mxu0 %v479
      %491 = vmatprep.subr.mxu0 0.0
      %492 = vmatpush1.msra.mxu0 %v478
      %493 = vmatprep.subr.mxu0 0.0
      %494 = vmatpush1.msra.mxu0 %v477
      %495 = vmatprep.subr.mxu0 0.0
      %496 = vmatpush1.msra.mxu0 %v476
      %497 = vmatprep.subr.mxu0 0.0
      %498 = vmatpush1.msra.mxu0 %v475
      %499 = vmatprep.subr.mxu0 0.0
      %500 = vmatpush1.msra.mxu0 %v474
      %501 = vmatprep.subr.mxu0 0.0
      %502 = vmatpush1.msra.mxu0 %v473
      %503 = vmatprep.subr.mxu0 0.0
      %504 = vmatpush1.msra.mxu0 %v472
      %505 = vmatprep.subr.mxu0 0.0
      %506 = vmatpush1.msra.mxu0 %v471
      %507 = vmatprep.subr.mxu0 0.0
      %508 = vmatpush1.msra.mxu0 %v470
      %509 = vmatprep.subr.mxu0 0.0
      %510 = vmatpush1.msra.mxu0 %v469
      %511 = vmatprep.subr.mxu0 0.0
      %512 = vmatpush1.msra.mxu0 %v468
      %513 = vmatprep.subr.mxu0 0.0
      %514 = vmatpush1.msra.mxu0 %v467
      %515 = vmatprep.subr.mxu0 0.0
      %516 = vmatpush2.msra.mxu0 0.0
      %517 = vmatprep.subr.mxu0 0.0
      %518 = vmatpush2.msra.mxu0 0.0
      %519 = vmatprep.subr.mxu0 0.0
      %520 = vmatpush2.msra.mxu0 0.0
      %521 = vmatprep.subr.mxu0 0.0
      %522 = vmatpush2.msra.mxu0 0.0
      %523 = vmatprep.subr.mxu0 0.0
      %524 = vmatpush2.msra.mxu0 0.0
      %525 = vmatprep.subr.mxu0 0.0
      %526 = vmatpush2.msra.mxu0 0.0
      %527 = vmatprep.subr.mxu0 0.0
      %528 = vmatpush2.msra.mxu0 0.0
      %529 = vmatprep.subr.mxu0 0.0
      %530 = vmatpush2.msra.mxu0 0.0
      %531 = vmatprep.subr.mxu0 0.0
      %532 = vmatpush2.msra.mxu0 0.0
      %533 = vmatprep.subr.mxu0 0.0
      %534 = vmatpush2.msra.mxu0 0.0
      %535 = vmatprep.subr.mxu0 0.0
      %536 = vmatpush2.msra.mxu0 0.0
      %537 = vmatprep.subr.mxu0 0.0
      %538 = vmatpush2.msra.mxu0 0.0
      %539 = vmatprep.subr.mxu0 0.0
      %540 = vmatpush2.msra.mxu0 0.0
      %541 = vmatprep.subr.mxu0 0.0
      %542 = vmatpush2.msra.mxu0 0.0
      %543 = vmatprep.subr.mxu0 0.0
      %544 = vmatpush2.msra.mxu0 0.0
      %545 = vmatprep.subr.mxu0 0.0
      %546 = vmatpush2.msra.mxu0 0.0
      %547 = vmatprep.mubr.f32.mxu0 0.0
      %548 = vmatmul.mubr.f32.gmra.mxu0 %v459
      %v549 = vpop.f32.mrf.mxu0
      %v550 = vadd.f32 0.0, %v549
      %v551 = vpop.f32.mrf.mxu0
      %552 = vmatprep.mubr.f32.mxu0 0.0
      %553 = vmatmul.mubr.f32.gmra.mxu0 %v460
      %v554 = vpop.f32.mrf.mxu0
      %v555 = vadd.f32 0.0, %v554
      %v556 = vpop.f32.mrf.mxu0
      %557 = vmatprep.mubr.f32.mxu0 0.0
      %558 = vmatmul.mubr.f32.gmra.mxu0 %v461
      %v559 = vpop.f32.mrf.mxu0
      %v560 = vadd.f32 0.0, %v559
      %v561 = vpop.f32.mrf.mxu0
      %562 = vmatprep.mubr.f32.mxu0 0.0
      %563 = vmatmul.mubr.f32.gmra.mxu0 %v462
      %v564 = vpop.f32.mrf.mxu0
      %v565 = vadd.f32 0.0, %v564
      %v566 = vpop.f32.mrf.mxu0
      %567 = vmatprep.mubr.f32.mxu0 0.0
      %568 = vmatmul.mubr.f32.gmra.mxu0 %v463
      %v569 = vpop.f32.mrf.mxu0
      %v570 = vadd.f32 0.0, %v569
      %v571 = vpop.f32.mrf.mxu0
      %572 = vmatprep.mubr.f32.mxu0 0.0
      %573 = vmatmul.mubr.f32.gmra.mxu0 %v464
      %v574 = vpop.f32.mrf.mxu0
      %v575 = vadd.f32 0.0, %v574
      %v576 = vpop.f32.mrf.mxu0
      %577 = vmatprep.mubr.f32.mxu0 0.0
      %578 = vmatmul.mubr.f32.gmra.mxu0 %v465
      %v579 = vpop.f32.mrf.mxu0
      %v580 = vadd.f32 0.0, %v579
      %v581 = vpop.f32.mrf.mxu0
      %582 = vmatprep.mubr.f32.mxu0 0.0
      %583 = vmatmul.mubr.f32.gmra.mxu0 %v466
      %v584 = vpop.f32.mrf.mxu0
      %v585 = vadd.f32 0.0, %v584
      %v586 = vpop.f32.mrf.mxu0
      %587 = vdwg.mxu0
      %v588 = vadd.f32 %v451, %v550
      %v589 = vadd.f32 %v452, %v555
      %v590 = vadd.f32 %v453, %v560
      %v591 = vadd.f32 %v454, %v565
      %v592 = vadd.f32 %v455, %v570
      %v593 = vadd.f32 %v456, %v575
      %v594 = vadd.f32 %v457, %v580
      %v595 = vadd.f32 %v458, %v585
      %596 = vst [vmem:[#allocation2] sm:$0xff] %v588
      %597 = vst [vmem:[#allocation2 + $0x8] sm:$0xff] %v589
      %598 = vst [vmem:[#allocation2 + $0x10] sm:$0xff] %v590
      %599 = vst [vmem:[#allocation2 + $0x18] sm:$0xff] %v591
      %600 = vst [vmem:[#allocation2 + $0x20] sm:$0xff] %v592
      %601 = vst [vmem:[#allocation2 + $0x28] sm:$0xff] %v593
      %602 = vst [vmem:[#allocation2 + $0x30] sm:$0xff] %v594
      %603 = vst [vmem:[#allocation2 + $0x38] sm:$0xff] %v595
      // Predicated region
      $region33: #{unet_down.4} parent=27 // pred_check
        %p604 = pneg %p439
      $region34: #{unet_down.4} parent=27 // pred_check_branch
        %606 = sbr.rel (%p604) target = $region36
      $region35: #{unet_down.4} parent=27 // pred_region
        %v607 = vld [vmem:[#allocation2] sm:$0xff]
        %v608 = vld [vmem:[#allocation2 + $0x8] sm:$0xff]
        %v609 = vld [vmem:[#allocation2 + $0x10] sm:$0xff]
        %v610 = vld [vmem:[#allocation2 + $0x18] sm:$0xff]
        %v611 = vld [vmem:[#allocation2 + $0x20] sm:$0xff]
        %v612 = vld [vmem:[#allocation2 + $0x28] sm:$0xff]
        %v613 = vld [vmem:[#allocation2 + $0x30] sm:$0xff]
        %v614 = vld [vmem:[#allocation2 + $0x38] sm:$0xff]
        %615 = vst [vmem:[%s272] sm:$0xff] %v607
        %616 = vst [vmem:[%s272 + $0x8] sm:$0xff] %v608
        %617 = vst [vmem:[%s272 + $0x10] sm:$0xff] %v609
        %618 = vst [vmem:[%s272 + $0x18] sm:$0xff] %v610
        %619 = vst [vmem:[%s272 + $0x20] sm:$0xff] %v611
        %620 = vst [vmem:[%s272 + $0x28] sm:$0xff] %v612
        %621 = vst [vmem:[%s272 + $0x30] sm:$0xff] %v613
        %622 = vst [vmem:[%s272 + $0x38] sm:$0xff] %v614
        %v623 = vadd.f32 %v607, %v608
        %v624 = vadd.f32 %v623, %v609
        %v625 = vadd.f32 %v624, %v610
        %v626 = vadd.f32 %v625, %v611
        %v627 = vadd.f32 %v626, %v612
        %v628 = vadd.f32 %v627, %v613
        %v629 = vadd.f32 %v628, %v614
        %v630 = vrot.slane %v629, 4
        %v631 = vadd.f32 %v629, %v630
        %v632 = vrot.slane %v631, 2
        %v633 = vadd.f32 %v631, %v632
        %v634 = vrot.slane %v633, 1
        %v635 = vadd.f32 %v633, %v634
        %636 = vst [vmem:[%s280] sm:$0x1] %v635
        %v637 = vmul.f32 %v607, %v607
        %v638 = vmul.f32 %v608, %v608
        %v639 = vmul.f32 %v609, %v609
        %v640 = vmul.f32 %v610, %v610
        %v641 = vmul.f32 %v611, %v611
        %v642 = vmul.f32 %v612, %v612
        %v643 = vmul.f32 %v613, %v613
        %v644 = vmul.f32 %v614, %v614
        %v645 = vadd.f32 %v637, %v638
        %v646 = vadd.f32 %v645, %v639
        %v647 = vadd.f32 %v646, %v640
        %v648 = vadd.f32 %v647, %v641
        %v649 = vadd.f32 %v648, %v642
        %v650 = vadd.f32 %v649, %v643
        %v651 = vadd.f32 %v650, %v644
        %v652 = vrot.slane %v651, 4
        %v653 = vadd.f32 %v651, %v652
        %v654 = vrot.slane %v653, 2
        %v655 = vadd.f32 %v653, %v654
        %v656 = vrot.slane %v655, 1
        %v657 = vadd.f32 %v655, %v656
        %658 = vst [vmem:[%s280 + $0x1] sm:$0x1] %v657
      $region36: #{unet_down.4} parent=27 // pred_fallthru
        _
      %s659 = smul.u32 8, %s23
      %p660 = scmp.lt.s32.totalorder %s22, 1
      %s661 = scalar_select %p660, %s22, 1
      %p662 = scmp.lt.s32.totalorder %s659, 7
      %s663 = scalar_select %p662, %s659, 7
      %s664 = smul.addr %s661, 8
      %s665 = sadd.s32 %s663, %s664
      %s666 = smul.addr %s665, 8
      %s667 = scalar_lea.vmem %s3, %s666
      %p668 = scmp.lt.s32.totalorder %s22, 1
      %s669 = scalar_select %p668, %s22, 1
      %p670 = scmp.lt.s32.totalorder %s23, 0
      %s671 = scalar_select %p670, %s23, 0
      %s672 = sadd.s32 %s671, %s669
      %s673 = smul.addr %s672, 2
      %s674 = scalar_lea.vmem %s4, %s673
      // Predicated region
      $region37: #{unet_down.4} parent=27 // pred_check
        %p675 = pneg %p112
      $region38: #{unet_down.4} parent=27 // pred_check_branch
        %677 = sbr.rel (%p675) target = $region40
      $region39: #{unet_down.4} parent=27 // pred_region
        %s678 = smul.u32 8, %s23
      $region40: #{unet_down.4} parent=27 // pred_fallthru
        _
      // Predicated region
      $region41: #{unet_down.4} parent=27 // pred_check
        %p679 = pneg %p140
      $region42: #{unet_down.4} parent=27 // pred_check_branch
        %681 = sbr.rel (%p679) target = $region44
      $region43: #{unet_down.4} parent=27 // pred_region
        _
      $region44: #{unet_down.4} parent=27 // pred_fallthru
        _
    $region28: #{unet_down.4} parent=5 // pred_fallthru
      _
    %p682 = scmp.le.s32.totalorder 2, %s12
    // Predicated region
    $region45: #{unet_down.4} parent=5 // pred_check
      %p683 = pneg %p682
    $region46: #{unet_down.4} parent=5 // pred_check_branch
      %685 = sbr.rel (%p683) target = $region48
    $region47: #{unet_down.4} parent=5 // pred_region
      %s686 = ssub.s32 %s12, 2
      // Predicated region
      $region49: #{unet_down.4} parent=47 // pred_check
        %p687 = pneg %p118
      $region50: #{unet_down.4} parent=47 // pred_check_branch
        %689 = sbr.rel (%p687) target = $region52
      $region51: #{unet_down.4} parent=47 // pred_region
        %s690 = smul.u32 8, %s26
        %p691 = scmp.lt.s32.totalorder %s25, 1
        %s692 = scalar_select %p691, %s25, 1
        %p693 = scmp.lt.s32.totalorder %s690, 7
        %s694 = scalar_select %p693, %s690, 7
        %s695 = smul.addr %s692, 8
        %s696 = sadd.s32 %s694, %s695
        %s697 = smul.addr %s696, 8
        %s698 = scalar_lea.vmem %s3, %s697
      $region52: #{unet_down.4} parent=47 // pred_fallthru
        _
      // Predicated region
      $region53: #{unet_down.4} parent=47 // pred_check
        %p699 = pneg %p146
      $region54: #{unet_down.4} parent=47 // pred_check_branch
        %701 = sbr.rel (%p699) target = $region56
      $region55: #{unet_down.4} parent=47 // pred_region
        %p702 = scmp.lt.s32.totalorder %s25, 1
        %s703 = scalar_select %p702, %s25, 1
        %p704 = scmp.lt.s32.totalorder %s26, 0
        %s705 = scalar_select %p704, %s26, 0
        %s706 = sadd.s32 %s705, %s703
        %s707 = smul.addr %s706, 2
        %s708 = scalar_lea.vmem %s4, %s707
      $region56: #{unet_down.4} parent=47 // pred_fallthru
        _
    $region48: #{unet_down.4} parent=5 // pred_fallthru
      _
  $region6: #{unet_down.4} parent=0 // loop_footer
    %s16 = sadd.s32 1, %s12
  $region7: #{unet_down.4} parent=0 // loop_footer_branch
    %11 = sbr.rel target = $region3
  $region8: #{unet_down.4} parent=0 // loop_exit
    _

</llo_original>
